<compile_context>
chip_gen: v5e
topology: v5e:2x2
jax: 0.10.0
libtpu: 0.0.40
codegen_flags: <defaults>
</compile_context>

<pallas_src>
from functools import partial

import jax
import jax.numpy as jnp
from jax.experimental import pallas as pl
from jax.experimental.pallas import tpu as pltpu


def _elu(x):
    # ELU(alpha=1): x if x > 0 else exp(x) - 1   (computed in f32)
    return jnp.where(x > 0, x, jnp.exp(jnp.minimum(x, 0.0)) - 1.0)


def mlp4d_kernel(x_ref, wd_ref, bd_ref, w1_ref, b1_ref, w2_ref, b2_ref,
                 gamma_ref, beta_ref, o_ref, *, n_in, bchunk):
    # x_ref   : (bchunk*n_in, A*F)   f32   one batch-chunk
    # wd_ref  : (H, n_in)            f32   dim_fc weight (torch layout: out x in)
    # bd_ref  : (H, 1)               f32
    # w1_ref  : (A*F, A*2F)          bf16  block-diagonal fc1 weight
    # b1_ref  : (1, A*2F)            f32   fc1 bias, node-tiled
    # w2_ref  : (A*2F, A*F)          bf16  block-diagonal fc2 weight
    # b2_ref  : (1, A*F)             f32   fc2 bias, node-tiled
    # gamma/beta : (1, A*F)          f32   LayerNorm affine, flattened (node, feature)
    # o_ref   : (bchunk*H, A*F)
    x = x_ref[...]                                   # (bchunk*n_in, AF) f32
    wd = wd_ref[...]                                 # (H, n_in)
    bd = bd_ref[...]                                 # (H, 1)

    # dim_fc + ELU via unrolled rank-1 FMAs on the VPU (K = n_in is tiny, so a
    # matmul would pad K to a full MXU pass for ~0 useful FLOPs).  This also
    # realizes the permute(1,3,0,2): rows become (batch-in-chunk, n_hid).
    blocks = []
    for b in range(bchunk):
        acc = wd[:, 0:1] * x[b * n_in:b * n_in + 1, :]
        for i in range(1, n_in):
            acc = acc + wd[:, i:i + 1] * x[b * n_in + i:b * n_in + i + 1, :]
        blocks.append(acc + bd)
    h0 = blocks[0] if bchunk == 1 else jnp.concatenate(blocks, axis=0)
    h0 = _elu(h0)                                    # (bchunk*H, AF) f32

    # fc1 + ELU (dropout p=0.0 is the identity).  bf16 operands, f32 accumulate.
    y1 = jnp.dot(h0.astype(jnp.bfloat16), w1_ref[...],
                 preferred_element_type=jnp.float32) + b1_ref[...]
    y1 = _elu(y1)                                    # (bchunk*H, A*2F) f32

    # fc2 + ELU
    y2 = jnp.dot(y1.astype(jnp.bfloat16), w2_ref[...],
                 preferred_element_type=jnp.float32) + b2_ref[...]
    y2 = _elu(y2)                                    # (bchunk*H, AF) f32

    # LayerNorm([node_num, feature_len]) == per-row normalization over A*F cols.
    # Single-pass moments: one sweep for sum and sum-of-squares.
    inv_n = 1.0 / y2.shape[-1]
    s = jnp.sum(y2, axis=-1, keepdims=True)
    s2 = jnp.sum(y2 * y2, axis=-1, keepdims=True)
    mu = s * inv_n
    var = s2 * inv_n - mu * mu
    yn = (y2 - mu) * jax.lax.rsqrt(var + 1e-5)
    o_ref[...] = (yn * gamma_ref[...] + beta_ref[...]).astype(o_ref.dtype)


def prepare_mlp4d_params(params, node_num):
    """One-time parameter preparation (hoisted out of the per-forward path):
    block-diagonal fc1/fc2 expansion, bias tiling, LN flattening, bf16 casts."""
    A = node_num
    H, _ = params["wd"].shape
    F = params["w1"].shape[1]
    AF, AF2 = A * F, A * 2 * F

    eyeA = jnp.eye(A, dtype=jnp.float32)
    w1t = params["w1"].T.astype(jnp.float32)         # (F, 2F)
    w2t = params["w2"].T.astype(jnp.float32)         # (2F, F)
    prep = {
        "wd": params["wd"].astype(jnp.float32),                                  # (H, I)
        "bd": params["bd"].reshape(H, 1).astype(jnp.float32),                    # (H, 1)
        "w1_big": jnp.einsum("ab,fg->afbg", eyeA, w1t)
                    .reshape(AF, AF2).astype(jnp.bfloat16),                      # (AF, AF2)
        "b1_big": jnp.tile(params["b1"], (A,)).reshape(1, AF2).astype(jnp.float32),
        "w2_big": jnp.einsum("ab,gf->agbf", eyeA, w2t)
                    .reshape(AF2, AF).astype(jnp.bfloat16),                      # (AF2, AF)
        "b2_big": jnp.tile(params["b2"], (A,)).reshape(1, AF).astype(jnp.float32),
        "gamma": params["ln_w"].reshape(1, AF).astype(jnp.float32),
        "beta": params["ln_b"].reshape(1, AF).astype(jnp.float32),
    }
    return jax.tree_util.tree_map(jnp.asarray, prep)


def mlp4d_forward(inputs, prep):
    """inputs: (node_num, batch, feature_len, n_in) -> (batch, n_hid, node_num, feature_len)"""
    A, B, F, I = inputs.shape
    H = prep["wd"].shape[0]
    AF = A * F
    AF2 = prep["w1_big"].shape[1]

    # 2-way parallel grid (keeps both v7x TensorCores busy) with batches of a
    # chunk stacked along the matmul M axis; falls back to 1 step for odd B.
    G = 2 if (B >= 2 and B % 2 == 0) else 1
    BC = B // G

    # Single materialized relayout: (A,B,F,I) -> (B,I,A,F) -> (G, BC*I, A*F).
    xT = jnp.transpose(inputs, (1, 3, 0, 2)).reshape(G, BC * I, AF)

    kernel = partial(mlp4d_kernel, n_in=I, bchunk=BC)

    out_flat = pl.pallas_call(
        kernel,
        out_shape=jax.ShapeDtypeStruct((G, BC * H, AF), inputs.dtype),
        grid=(G,),
        in_specs=[
            pl.BlockSpec((None, BC * I, AF), lambda g: (g, 0, 0)),  # x (per-chunk slab)
            pl.BlockSpec((H, I), lambda g: (0, 0)),                 # dim_fc weight
            pl.BlockSpec((H, 1), lambda g: (0, 0)),                 # dim_fc bias
            pl.BlockSpec((AF, AF2), lambda g: (0, 0)),              # fc1 block-diag (bf16)
            pl.BlockSpec((1, AF2), lambda g: (0, 0)),               # fc1 bias (tiled)
            pl.BlockSpec((AF2, AF), lambda g: (0, 0)),              # fc2 block-diag (bf16)
            pl.BlockSpec((1, AF), lambda g: (0, 0)),                # fc2 bias (tiled)
            pl.BlockSpec((1, AF), lambda g: (0, 0)),                # ln weight
            pl.BlockSpec((1, AF), lambda g: (0, 0)),                # ln bias
        ],
        out_specs=pl.BlockSpec((None, BC * H, AF), lambda g: (g, 0, 0)),
        compiler_params=pltpu.CompilerParams(
            dimension_semantics=("parallel",)),
    )(xT, prep["wd"], prep["bd"], prep["w1_big"], prep["b1_big"],
      prep["w2_big"], prep["b2_big"], prep["gamma"], prep["beta"])

    # (G, BC*H, AF) -> (B, H, A, F); chunk-major batch order == original order.
    return out_flat.reshape(B, H, A, F)


def mlp4d_reference(inputs, params):
    """Pure-JAX reference mirroring the PyTorch forward."""
    hp = jax.lax.Precision.HIGHEST
    x = _elu(jnp.einsum("abfi,hi->abfh", inputs, params["wd"], precision=hp)
             + params["bd"])
    x = jnp.transpose(x, (1, 3, 0, 2))                              # (B, H, A, F)
    x = _elu(jnp.einsum("bhaf,gf->bhag", x, params["w1"], precision=hp)
             + params["b1"])
    x = _elu(jnp.einsum("bhag,fg->bhaf", x, params["w2"], precision=hp)
             + params["b2"])
    mu = jnp.mean(x, axis=(2, 3), keepdims=True)
    var = jnp.mean((x - mu) ** 2, axis=(2, 3), keepdims=True)
    return (x - mu) * jax.lax.rsqrt(var + 1e-5) * params["ln_w"] + params["ln_b"]


if __name__ == "__main__":
    # Small shapes consistent with MLP4d: node_num=8, batch=2, feature_len=16,
    # n_in=4, n_hid=32.  Input follows the module convention
    # (node_num, batch, feature_len, n_in); the LayerNorm "node" branch is taken.
    # TODO(synk): the BatchNorm / ln_edge branches and training-mode dropout (p>0)
    # are not exercised by this forward configuration and are not implemented.
    A, B, F, I, H = 8, 2, 16, 4, 32

    key = jax.random.PRNGKey(0)
    ks = jax.random.split(key, 10)
    params = {
        "wd":   0.3 * jax.random.normal(ks[0], (H, I), jnp.float32),      # dim_fc.weight
        "bd":   0.1 * jax.random.normal(ks[1], (H,), jnp.float32),        # dim_fc.bias
        "w1":   0.2 * jax.random.normal(ks[2], (2 * F, F), jnp.float32),  # fc1.weight
        "b1":   0.1 * jax.random.normal(ks[3], (2 * F,), jnp.float32),    # fc1.bias
        "w2":   0.2 * jax.random.normal(ks[4], (F, 2 * F), jnp.float32),  # fc2.weight
        "b2":   0.1 * jax.random.normal(ks[5], (F,), jnp.float32),        # fc2.bias
        "ln_w": 1.0 + 0.1 * jax.random.normal(ks[6], (A, F), jnp.float32),  # ln_node.weight
        "ln_b": 0.1 * jax.random.normal(ks[7], (A, F), jnp.float32),        # ln_node.bias
    }
    inputs = jax.random.normal(ks[8], (A, B, F, I), jnp.float32)

    # One-time parameter preparation (kept out of the per-forward path).
    prep = jax.block_until_ready(prepare_mlp4d_params(params, node_num=A))

    fwd = jax.jit(mlp4d_forward)
    out = jax.block_until_ready(fwd(inputs, prep))

    ref = mlp4d_reference(inputs, params)
    assert out.shape == (B, H, A, F), out.shape
    assert bool(jnp.all(jnp.isfinite(out)))
    assert bool(jnp.allclose(out, ref, atol=2e-2, rtol=2e-2)), (
        float(jnp.max(jnp.abs(out - ref))))

    print("KERNEL_OK")
</pallas_src>

<mosaic_0001>
module attributes {stable_mosaic.version = 11 : i64} {
  func.func @mlp4d_kernel(%arg0: i32, %arg1: memref<1x4x128xf32, #tpu.memory_space<vmem>>, %arg2: memref<32x4xf32, #tpu.memory_space<vmem>>, %arg3: memref<32x1xf32, #tpu.memory_space<vmem>>, %arg4: memref<128x256xbf16, #tpu.memory_space<vmem>>, %arg5: memref<1x256xf32, #tpu.memory_space<vmem>>, %arg6: memref<256x128xbf16, #tpu.memory_space<vmem>>, %arg7: memref<1x128xf32, #tpu.memory_space<vmem>>, %arg8: memref<1x128xf32, #tpu.memory_space<vmem>>, %arg9: memref<1x128xf32, #tpu.memory_space<vmem>>, %arg10: memref<1x32x128xf32, #tpu.memory_space<vmem>>) attributes {dimension_semantics = [#tpu.dimension_semantics<parallel>], iteration_bounds = array<i64: 2>, scalar_prefetch = 0 : i64, scratch_operands = 0 : i64, tpu.core_type = #tpu.core_type<tc>, window_params = [{transform_indices = @transform_0, window_bounds = array<i64: 1, 4, 128>}, {pipeline_mode = #tpu.pipeline_mode<synchronous>, transform_indices = @transform_1, window_bounds = array<i64: 32, 4>}, {pipeline_mode = #tpu.pipeline_mode<synchronous>, transform_indices = @transform_2, window_bounds = array<i64: 32, 1>}, {pipeline_mode = #tpu.pipeline_mode<synchronous>, transform_indices = @transform_3, window_bounds = array<i64: 128, 256>}, {pipeline_mode = #tpu.pipeline_mode<synchronous>, transform_indices = @transform_4, window_bounds = array<i64: 1, 256>}, {pipeline_mode = #tpu.pipeline_mode<synchronous>, transform_indices = @transform_5, window_bounds = array<i64: 256, 128>}, {pipeline_mode = #tpu.pipeline_mode<synchronous>, transform_indices = @transform_6, window_bounds = array<i64: 1, 128>}, {pipeline_mode = #tpu.pipeline_mode<synchronous>, transform_indices = @transform_7, window_bounds = array<i64: 1, 128>}, {pipeline_mode = #tpu.pipeline_mode<synchronous>, transform_indices = @transform_8, window_bounds = array<i64: 1, 128>}, {transform_indices = @transform_9, window_bounds = array<i64: 1, 32, 128>}]} {
    %c0 = arith.constant 0 : index
    %c0_0 = arith.constant 0 : index
    %c0_1 = arith.constant 0 : index
    %0 = vector.load %arg1[%c0, %c0_0, %c0_1] : memref<1x4x128xf32, #tpu.memory_space<vmem>>, vector<1x4x128xf32>
    %1 = vector.shape_cast %0 : vector<1x4x128xf32> to vector<4x128xf32>
    %c0_2 = arith.constant 0 : index
    %c0_3 = arith.constant 0 : index
    %2 = vector.load %arg2[%c0_2, %c0_3] : memref<32x4xf32, #tpu.memory_space<vmem>>, vector<32x4xf32>
    %c0_4 = arith.constant 0 : index
    %c0_5 = arith.constant 0 : index
    %3 = vector.load %arg3[%c0_4, %c0_5] : memref<32x1xf32, #tpu.memory_space<vmem>>, vector<32x1xf32>
    %4 = vector.extract_strided_slice %2 {offsets = [0, 0], sizes = [32, 1], strides = [1, 1]} : vector<32x4xf32> to vector<32x1xf32>
    %5 = vector.extract_strided_slice %1 {offsets = [0, 0], sizes = [1, 128], strides = [1, 1]} : vector<4x128xf32> to vector<1x128xf32>
    %6 = vector.broadcast %4 : vector<32x1xf32> to vector<32x128xf32>
    %7 = vector.broadcast %5 : vector<1x128xf32> to vector<32x128xf32>
    %8 = arith.mulf %6, %7 : vector<32x128xf32>
    %9 = vector.extract_strided_slice %2 {offsets = [0, 1], sizes = [32, 1], strides = [1, 1]} : vector<32x4xf32> to vector<32x1xf32>
    %10 = vector.extract_strided_slice %1 {offsets = [1, 0], sizes = [1, 128], strides = [1, 1]} : vector<4x128xf32> to vector<1x128xf32>
    %11 = vector.broadcast %9 : vector<32x1xf32> to vector<32x128xf32>
    %12 = vector.broadcast %10 : vector<1x128xf32> to vector<32x128xf32>
    %13 = arith.mulf %11, %12 : vector<32x128xf32>
    %14 = arith.addf %8, %13 : vector<32x128xf32>
    %15 = vector.extract_strided_slice %2 {offsets = [0, 2], sizes = [32, 1], strides = [1, 1]} : vector<32x4xf32> to vector<32x1xf32>
    %16 = vector.extract_strided_slice %1 {offsets = [2, 0], sizes = [1, 128], strides = [1, 1]} : vector<4x128xf32> to vector<1x128xf32>
    %17 = vector.broadcast %15 : vector<32x1xf32> to vector<32x128xf32>
    %18 = vector.broadcast %16 : vector<1x128xf32> to vector<32x128xf32>
    %19 = arith.mulf %17, %18 : vector<32x128xf32>
    %20 = arith.addf %14, %19 : vector<32x128xf32>
    %21 = vector.extract_strided_slice %2 {offsets = [0, 3], sizes = [32, 1], strides = [1, 1]} : vector<32x4xf32> to vector<32x1xf32>
    %22 = vector.extract_strided_slice %1 {offsets = [3, 0], sizes = [1, 128], strides = [1, 1]} : vector<4x128xf32> to vector<1x128xf32>
    %23 = vector.broadcast %21 : vector<32x1xf32> to vector<32x128xf32>
    %24 = vector.broadcast %22 : vector<1x128xf32> to vector<32x128xf32>
    %25 = arith.mulf %23, %24 : vector<32x128xf32>
    %26 = arith.addf %20, %25 : vector<32x128xf32>
    %27 = vector.broadcast %3 : vector<32x1xf32> to vector<32x128xf32>
    %28 = arith.addf %26, %27 : vector<32x128xf32>
    %cst = arith.constant 0.000000e+00 : f32
    %29 = vector.broadcast %cst : f32 to vector<32x128xf32>
    %30 = arith.cmpf ogt, %28, %29 : vector<32x128xf32>
    %cst_6 = arith.constant 0.000000e+00 : f32
    %31 = vector.broadcast %cst_6 : f32 to vector<32x128xf32>
    %32 = arith.minimumf %28, %31 : vector<32x128xf32>
    %33 = math.exp %32 : vector<32x128xf32>
    %cst_7 = arith.constant 1.000000e+00 : f32
    %34 = vector.broadcast %cst_7 : f32 to vector<32x128xf32>
    %35 = arith.subf %33, %34 : vector<32x128xf32>
    %36 = arith.select %30, %28, %35 : vector<32x128xi1>, vector<32x128xf32>
    %37 = arith.truncf %36 : vector<32x128xf32> to vector<32x128xbf16>
    %c0_8 = arith.constant 0 : index
    %c0_9 = arith.constant 0 : index
    %38 = vector.load %arg4[%c0_8, %c0_9] : memref<128x256xbf16, #tpu.memory_space<vmem>>, vector<128x256xbf16>
    %cst_10 = arith.constant dense<0.000000e+00> : vector<32x256xf32>
    %39 = tpu.matmul %37, %38, %cst_10 {dimension_numbers = #tpu.dot_dimension_numbers<[1], [0], [0], [1], [0, 0, 1, 1], [], []>} : vector<32x128xbf16>, vector<128x256xbf16>, vector<32x256xf32> -> vector<32x256xf32>
    %c0_11 = arith.constant 0 : index
    %c0_12 = arith.constant 0 : index
    %40 = vector.load %arg5[%c0_11, %c0_12] : memref<1x256xf32, #tpu.memory_space<vmem>>, vector<1x256xf32>
    %41 = vector.broadcast %40 : vector<1x256xf32> to vector<32x256xf32>
    %42 = arith.addf %39, %41 : vector<32x256xf32>
    %cst_13 = arith.constant 0.000000e+00 : f32
    %43 = vector.broadcast %cst_13 : f32 to vector<32x256xf32>
    %44 = arith.cmpf ogt, %42, %43 : vector<32x256xf32>
    %cst_14 = arith.constant 0.000000e+00 : f32
    %45 = vector.broadcast %cst_14 : f32 to vector<32x256xf32>
    %46 = arith.minimumf %42, %45 : vector<32x256xf32>
    %47 = math.exp %46 : vector<32x256xf32>
    %cst_15 = arith.constant 1.000000e+00 : f32
    %48 = vector.broadcast %cst_15 : f32 to vector<32x256xf32>
    %49 = arith.subf %47, %48 : vector<32x256xf32>
    %50 = arith.select %44, %42, %49 : vector<32x256xi1>, vector<32x256xf32>
    %51 = arith.truncf %50 : vector<32x256xf32> to vector<32x256xbf16>
    %c0_16 = arith.constant 0 : index
    %c0_17 = arith.constant 0 : index
    %52 = vector.load %arg6[%c0_16, %c0_17] : memref<256x128xbf16, #tpu.memory_space<vmem>>, vector<256x128xbf16>
    %cst_18 = arith.constant dense<0.000000e+00> : vector<32x128xf32>
    %53 = tpu.matmul %51, %52, %cst_18 {dimension_numbers = #tpu.dot_dimension_numbers<[1], [0], [0], [1], [0, 0, 1, 1], [], []>} : vector<32x256xbf16>, vector<256x128xbf16>, vector<32x128xf32> -> vector<32x128xf32>
    %c0_19 = arith.constant 0 : index
    %c0_20 = arith.constant 0 : index
    %54 = vector.load %arg7[%c0_19, %c0_20] : memref<1x128xf32, #tpu.memory_space<vmem>>, vector<1x128xf32>
    %55 = vector.broadcast %54 : vector<1x128xf32> to vector<32x128xf32>
    %56 = arith.addf %53, %55 : vector<32x128xf32>
    %cst_21 = arith.constant 0.000000e+00 : f32
    %57 = vector.broadcast %cst_21 : f32 to vector<32x128xf32>
    %58 = arith.cmpf ogt, %56, %57 : vector<32x128xf32>
    %cst_22 = arith.constant 0.000000e+00 : f32
    %59 = vector.broadcast %cst_22 : f32 to vector<32x128xf32>
    %60 = arith.minimumf %56, %59 : vector<32x128xf32>
    %61 = math.exp %60 : vector<32x128xf32>
    %cst_23 = arith.constant 1.000000e+00 : f32
    %62 = vector.broadcast %cst_23 : f32 to vector<32x128xf32>
    %63 = arith.subf %61, %62 : vector<32x128xf32>
    %64 = arith.select %58, %56, %63 : vector<32x128xi1>, vector<32x128xf32>
    %cst_24 = arith.constant dense<0.000000e+00> : vector<32xf32>
    %65 = vector.multi_reduction <add>, %64, %cst_24 [1] : vector<32x128xf32> to vector<32xf32>
    %66 = vector.shape_cast %65 : vector<32xf32> to vector<32x1xf32>
    %67 = arith.mulf %64, %64 : vector<32x128xf32>
    %cst_25 = arith.constant dense<0.000000e+00> : vector<32xf32>
    %68 = vector.multi_reduction <add>, %67, %cst_25 [1] : vector<32x128xf32> to vector<32xf32>
    %69 = vector.shape_cast %68 : vector<32xf32> to vector<32x1xf32>
    %cst_26 = arith.constant 7.812500e-03 : f32
    %70 = vector.broadcast %cst_26 : f32 to vector<32x1xf32>
    %71 = arith.mulf %66, %70 : vector<32x1xf32>
    %cst_27 = arith.constant 7.812500e-03 : f32
    %72 = vector.broadcast %cst_27 : f32 to vector<32x1xf32>
    %73 = arith.mulf %69, %72 : vector<32x1xf32>
    %74 = arith.mulf %71, %71 : vector<32x1xf32>
    %75 = arith.subf %73, %74 : vector<32x1xf32>
    %76 = vector.broadcast %71 : vector<32x1xf32> to vector<32x128xf32>
    %77 = arith.subf %64, %76 : vector<32x128xf32>
    %cst_28 = arith.constant 9.99999974E-6 : f32
    %78 = vector.broadcast %cst_28 : f32 to vector<32x1xf32>
    %79 = arith.addf %75, %78 : vector<32x1xf32>
    %80 = math.rsqrt %79 : vector<32x1xf32>
    %81 = vector.broadcast %80 : vector<32x1xf32> to vector<32x128xf32>
    %82 = arith.mulf %77, %81 : vector<32x128xf32>
    %c0_29 = arith.constant 0 : index
    %c0_30 = arith.constant 0 : index
    %83 = vector.load %arg8[%c0_29, %c0_30] : memref<1x128xf32, #tpu.memory_space<vmem>>, vector<1x128xf32>
    %84 = vector.broadcast %83 : vector<1x128xf32> to vector<32x128xf32>
    %85 = arith.mulf %82, %84 : vector<32x128xf32>
    %c0_31 = arith.constant 0 : index
    %c0_32 = arith.constant 0 : index
    %86 = vector.load %arg9[%c0_31, %c0_32] : memref<1x128xf32, #tpu.memory_space<vmem>>, vector<1x128xf32>
    %87 = vector.broadcast %86 : vector<1x128xf32> to vector<32x128xf32>
    %88 = arith.addf %85, %87 : vector<32x128xf32>
    %c0_33 = arith.constant 0 : index
    %c0_34 = arith.constant 0 : index
    %c0_35 = arith.constant 0 : index
    %89 = vector.load %arg10[%c0_33, %c0_34, %c0_35] : memref<1x32x128xf32, #tpu.memory_space<vmem>>, vector<1x32x128xf32>
    %90 = vector.shape_cast %89 : vector<1x32x128xf32> to vector<32x128xf32>
    %91 = vector.shape_cast %88 : vector<32x128xf32> to vector<1x32x128xf32>
    tpu.vector_store %arg10[%c0_33, %c0_34, %c0_35], %91 {strides = array<i32>} : memref<1x32x128xf32, #tpu.memory_space<vmem>>, vector<1x32x128xf32>,
    return
  }
  func.func @transform_0(%arg0: i32) -> (i32, i32, i32) {
    %c0_i32 = arith.constant 0 : i32
    %c0_i32_0 = arith.constant 0 : i32
    %c0_i32_1 = arith.constant 0 : i32
    return %arg0, %c0_i32, %c0_i32_0 : i32, i32, i32
  }
  func.func @transform_1(%arg0: i32) -> (i32, i32) {
    %c0_i32 = arith.constant 0 : i32
    %c0_i32_0 = arith.constant 0 : i32
    %c0_i32_1 = arith.constant 0 : i32
    return %c0_i32, %c0_i32_0 : i32, i32
  }
  func.func @transform_2(%arg0: i32) -> (i32, i32) {
    %c0_i32 = arith.constant 0 : i32
    %c0_i32_0 = arith.constant 0 : i32
    %c0_i32_1 = arith.constant 0 : i32
    return %c0_i32, %c0_i32_0 : i32, i32
  }
  func.func @transform_3(%arg0: i32) -> (i32, i32) {
    %c0_i32 = arith.constant 0 : i32
    %c0_i32_0 = arith.constant 0 : i32
    %c0_i32_1 = arith.constant 0 : i32
    return %c0_i32, %c0_i32_0 : i32, i32
  }
  func.func @transform_4(%arg0: i32) -> (i32, i32) {
    %c0_i32 = arith.constant 0 : i32
    %c0_i32_0 = arith.constant 0 : i32
    %c0_i32_1 = arith.constant 0 : i32
    return %c0_i32, %c0_i32_0 : i32, i32
  }
  func.func @transform_5(%arg0: i32) -> (i32, i32) {
    %c0_i32 = arith.constant 0 : i32
    %c0_i32_0 = arith.constant 0 : i32
    %c0_i32_1 = arith.constant 0 : i32
    return %c0_i32, %c0_i32_0 : i32, i32
  }
  func.func @transform_6(%arg0: i32) -> (i32, i32) {
    %c0_i32 = arith.constant 0 : i32
    %c0_i32_0 = arith.constant 0 : i32
    %c0_i32_1 = arith.constant 0 : i32
    return %c0_i32, %c0_i32_0 : i32, i32
  }
  func.func @transform_7(%arg0: i32) -> (i32, i32) {
    %c0_i32 = arith.constant 0 : i32
    %c0_i32_0 = arith.constant 0 : i32
    %c0_i32_1 = arith.constant 0 : i32
    return %c0_i32, %c0_i32_0 : i32, i32
  }
  func.func @transform_8(%arg0: i32) -> (i32, i32) {
    %c0_i32 = arith.constant 0 : i32
    %c0_i32_0 = arith.constant 0 : i32
    %c0_i32_1 = arith.constant 0 : i32
    return %c0_i32, %c0_i32_0 : i32, i32
  }
  func.func @transform_9(%arg0: i32) -> (i32, i32, i32) {
    %c0_i32 = arith.constant 0 : i32
    %c0_i32_0 = arith.constant 0 : i32
    %c0_i32_1 = arith.constant 0 : i32
    return %arg0, %c0_i32, %c0_i32_0 : i32, i32, i32
  }
}

</mosaic_0001>

<llo_original>
// kernel: mlp4d_forward.1
$region0: #{mlp4d_forward.1}
  #allocation0 [shape = 'u32[]', space=smem, size = 0x4, offset = 0x4, fixed_abs, tag = 'smem constant byte address 0x4 - core index']
  #allocation1 [shape = 'u32[72,128]{1,0:T(1,128)}', space=vmem, size = 0x9000, scoped, tag = 'internal scratch']
  %s0 = inlined_call_operand.vmem [shape: f32[2,4,128], index: 0, kind: input, shape index: {}]
  %s1 = inlined_call_operand.vmem [shape: f32[32,4], index: 1, kind: input, shape index: {}]
  %s2 = inlined_call_operand.vmem [shape: f32[32,1], index: 2, kind: input, shape index: {}]
  %s3 = inlined_call_operand.vmem [shape: bf16[128,256], index: 3, kind: input, shape index: {}]
  %s4 = inlined_call_operand.vmem [shape: f32[1,256], index: 4, kind: input, shape index: {}]
  %s5 = inlined_call_operand.hbm [shape: bf16[256,128], index: 5, kind: input, shape index: {}]
  %s6 = inlined_call_operand.vmem [shape: f32[1,128], index: 6, kind: input, shape index: {}]
  %s7 = inlined_call_operand.vmem [shape: f32[1,128], index: 7, kind: input, shape index: {}]
  %s8 = inlined_call_operand.vmem [shape: f32[1,128], index: 8, kind: input, shape index: {}]
  %s9 = inlined_call_operand.vmem [shape: f32[2,32,128], index: 9, kind: output, shape index: {}]
  %s10 = sld [smem:[#allocation0]]
  $region73: #{mlp4d_forward.1} parent=0
    _
  %s12 = ssub.s32 1, %s10
  %s13 = scalar_select 0, %s12, %s10
  $region1: #{mlp4d_forward.1} parent=0
    #allocation2 [shape = 'u8[65536]{0}', space=vmem, size = 0x10000, scoped, tag = 'input window, operand 5, single buffered']
    #allocation3 [shape = 's32[2]{0}', space=sflag, size = 0x8, scoped, tag = 'scoped memory for mlp4d_forward.1']
    %14 = vsyncpa [#allocation3], 0
    loop: start=0, step=1, limit=4
    $region2: #{mlp4d_forward.1} parent=1 // loop_pre_header
      _
    $region3: #{mlp4d_forward.1} parent=1 // loop_header
      %s16 = sphi 0, %s20
      %p17 = scmp.ge.s32.totalorder %s16, 4
      %s26 = sphi 0, %s28
      %s29 = sphi 0, %s26
      %s30 = sphi 0, %s29
      %s46 = sphi 0, %s30
      %s50 = sphi 0, %s50
      %s52 = sphi 0, %s50
      %s53 = sphi 0, %s52
      %s67 = sphi 0, %s53
      %s71 = sphi 0, %s71
      %s73 = sphi 0, %s71
      %s74 = sphi 0, %s73
      %s88 = sphi 0, %s74
      %s92 = sphi 0, %s92
      %s94 = sphi 0, %s92
      %s95 = sphi 0, %s94
      %s109 = sphi 0, %s95
      %s113 = sphi 0, %s113
      %s115 = sphi 0, %s113
      %s116 = sphi 0, %s115
      %s130 = sphi 0, %s116
      %s134 = sphi 0, %s134
      %s136 = sphi 0, %s134
      %s137 = sphi 0, %s136
      %s151 = sphi 0, %s137
      %s155 = sphi 0, %s155
      %s157 = sphi 0, %s155
      %s158 = sphi 0, %s157
      %s172 = sphi 0, %s158
      %s176 = sphi 0, %s176
      %s178 = sphi 0, %s176
      %s179 = sphi 0, %s178
      %s193 = sphi 0, %s179
      %s197 = sphi 0, %s197
      %s199 = sphi 0, %s197
      %s200 = sphi 0, %s199
      %s214 = sphi 0, %s200
      %s220 = sphi 0, %s222
      %s223 = sphi 0, %s220
      %s224 = sphi 0, %s223
      %s240 = sphi 0, %s224
    $region4: #{mlp4d_forward.1} parent=1 // loop_header_branch
      %19 = sbr.rel (%p17) target = $region8
    $region5: #{mlp4d_forward.1} parent=1 // loop_body
      %s21 = ssub.s32 %s16, 1
      %s22 = ssub.s32 %s16, 2
      %s23 = sadd.s32 %s16, 1
      %s24 = ssub.s32 %s16, %s23
      %p25 = scmp.eq.s32.totalorder %s24, 0
      %s27 = sadd.s32 %s26, 1
      %s28 = scalar_select %p25, %s26, %s27
      %p31 = pneg %p25
      %p32 = scmp.eq.s32.totalorder %s16, 1
      %p33 = por %p31, %p32
      %p34 = scmp.ne.s32.totalorder %s26, %s29
      %p35 = scmp.eq.s32.totalorder %s16, 0
      %p36 = por %p34, %p35
      %p37 = scmp.ne.s32.totalorder %s26, %s29
      %p38 = scmp.eq.s32.totalorder %s21, 1
      %p39 = por %p37, %p38
      %p40 = scmp.ne.s32.totalorder %s29, %s30
      %p41 = scmp.eq.s32.totalorder %s21, 0
      %p42 = por %p40, %p41
      %p43 = scmp.ne.s32.totalorder %s29, %s30
      %p44 = scmp.eq.s32.totalorder %s22, 1
      %p45 = por %p43, %p44
      %p47 = scmp.ne.s32.totalorder %s30, %s46
      %p48 = scmp.eq.s32.totalorder %s22, 0
      %p49 = por %p47, %p48
      %s51 = sadd.s32 %s50, 1
      %p54 = scmp.eq.s32.totalorder %s16, 1
      %p55 = scmp.ne.s32.totalorder %s50, %s52
      %p56 = scmp.eq.s32.totalorder %s16, 0
      %p57 = por %p55, %p56
      %p58 = scmp.ne.s32.totalorder %s50, %s52
      %p59 = scmp.eq.s32.totalorder %s21, 1
      %p60 = por %p58, %p59
      %p61 = scmp.ne.s32.totalorder %s52, %s53
      %p62 = scmp.eq.s32.totalorder %s21, 0
      %p63 = por %p61, %p62
      %p64 = scmp.ne.s32.totalorder %s52, %s53
      %p65 = scmp.eq.s32.totalorder %s22, 1
      %p66 = por %p64, %p65
      %p68 = scmp.ne.s32.totalorder %s53, %s67
      %p69 = scmp.eq.s32.totalorder %s22, 0
      %p70 = por %p68, %p69
      %s72 = sadd.s32 %s71, 1
      %p75 = scmp.eq.s32.totalorder %s16, 1
      %p76 = scmp.ne.s32.totalorder %s71, %s73
      %p77 = scmp.eq.s32.totalorder %s16, 0
      %p78 = por %p76, %p77
      %p79 = scmp.ne.s32.totalorder %s71, %s73
      %p80 = scmp.eq.s32.totalorder %s21, 1
      %p81 = por %p79, %p80
      %p82 = scmp.ne.s32.totalorder %s73, %s74
      %p83 = scmp.eq.s32.totalorder %s21, 0
      %p84 = por %p82, %p83
      %p85 = scmp.ne.s32.totalorder %s73, %s74
      %p86 = scmp.eq.s32.totalorder %s22, 1
      %p87 = por %p85, %p86
      %p89 = scmp.ne.s32.totalorder %s74, %s88
      %p90 = scmp.eq.s32.totalorder %s22, 0
      %p91 = por %p89, %p90
      %s93 = sadd.s32 %s92, 1
      %p96 = scmp.eq.s32.totalorder %s16, 1
      %p97 = scmp.ne.s32.totalorder %s92, %s94
      %p98 = scmp.eq.s32.totalorder %s16, 0
      %p99 = por %p97, %p98
      %p100 = scmp.ne.s32.totalorder %s92, %s94
      %p101 = scmp.eq.s32.totalorder %s21, 1
      %p102 = por %p100, %p101
      %p103 = scmp.ne.s32.totalorder %s94, %s95
      %p104 = scmp.eq.s32.totalorder %s21, 0
      %p105 = por %p103, %p104
      %p106 = scmp.ne.s32.totalorder %s94, %s95
      %p107 = scmp.eq.s32.totalorder %s22, 1
      %p108 = por %p106, %p107
      %p110 = scmp.ne.s32.totalorder %s95, %s109
      %p111 = scmp.eq.s32.totalorder %s22, 0
      %p112 = por %p110, %p111
      %s114 = sadd.s32 %s113, 1
      %p117 = scmp.eq.s32.totalorder %s16, 1
      %p118 = scmp.ne.s32.totalorder %s113, %s115
      %p119 = scmp.eq.s32.totalorder %s16, 0
      %p120 = por %p118, %p119
      %p121 = scmp.ne.s32.totalorder %s113, %s115
      %p122 = scmp.eq.s32.totalorder %s21, 1
      %p123 = por %p121, %p122
      %p124 = scmp.ne.s32.totalorder %s115, %s116
      %p125 = scmp.eq.s32.totalorder %s21, 0
      %p126 = por %p124, %p125
      %p127 = scmp.ne.s32.totalorder %s115, %s116
      %p128 = scmp.eq.s32.totalorder %s22, 1
      %p129 = por %p127, %p128
      %p131 = scmp.ne.s32.totalorder %s116, %s130
      %p132 = scmp.eq.s32.totalorder %s22, 0
      %p133 = por %p131, %p132
      %s135 = sadd.s32 %s134, 1
      %p138 = scmp.eq.s32.totalorder %s16, 1
      %p139 = scmp.ne.s32.totalorder %s134, %s136
      %p140 = scmp.eq.s32.totalorder %s16, 0
      %p141 = por %p139, %p140
      %p142 = scmp.ne.s32.totalorder %s134, %s136
      %p143 = scmp.eq.s32.totalorder %s21, 1
      %p144 = por %p142, %p143
      %p145 = scmp.ne.s32.totalorder %s136, %s137
      %p146 = scmp.eq.s32.totalorder %s21, 0
      %p147 = por %p145, %p146
      %p148 = scmp.ne.s32.totalorder %s136, %s137
      %p149 = scmp.eq.s32.totalorder %s22, 1
      %p150 = por %p148, %p149
      %p152 = scmp.ne.s32.totalorder %s137, %s151
      %p153 = scmp.eq.s32.totalorder %s22, 0
      %p154 = por %p152, %p153
      %s156 = sadd.s32 %s155, 1
      %p159 = scmp.eq.s32.totalorder %s16, 1
      %p160 = scmp.ne.s32.totalorder %s155, %s157
      %p161 = scmp.eq.s32.totalorder %s16, 0
      %p162 = por %p160, %p161
      %p163 = scmp.ne.s32.totalorder %s155, %s157
      %p164 = scmp.eq.s32.totalorder %s21, 1
      %p165 = por %p163, %p164
      %p166 = scmp.ne.s32.totalorder %s157, %s158
      %p167 = scmp.eq.s32.totalorder %s21, 0
      %p168 = por %p166, %p167
      %p169 = scmp.ne.s32.totalorder %s157, %s158
      %p170 = scmp.eq.s32.totalorder %s22, 1
      %p171 = por %p169, %p170
      %p173 = scmp.ne.s32.totalorder %s158, %s172
      %p174 = scmp.eq.s32.totalorder %s22, 0
      %p175 = por %p173, %p174
      %s177 = sadd.s32 %s176, 1
      %p180 = scmp.eq.s32.totalorder %s16, 1
      %p181 = scmp.ne.s32.totalorder %s176, %s178
      %p182 = scmp.eq.s32.totalorder %s16, 0
      %p183 = por %p181, %p182
      %p184 = scmp.ne.s32.totalorder %s176, %s178
      %p185 = scmp.eq.s32.totalorder %s21, 1
      %p186 = por %p184, %p185
      %p187 = scmp.ne.s32.totalorder %s178, %s179
      %p188 = scmp.eq.s32.totalorder %s21, 0
      %p189 = por %p187, %p188
      %p190 = scmp.ne.s32.totalorder %s178, %s179
      %p191 = scmp.eq.s32.totalorder %s22, 1
      %p192 = por %p190, %p191
      %p194 = scmp.ne.s32.totalorder %s179, %s193
      %p195 = scmp.eq.s32.totalorder %s22, 0
      %p196 = por %p194, %p195
      %s198 = sadd.s32 %s197, 1
      %p201 = scmp.eq.s32.totalorder %s16, 1
      %p202 = scmp.ne.s32.totalorder %s197, %s199
      %p203 = scmp.eq.s32.totalorder %s16, 0
      %p204 = por %p202, %p203
      %p205 = scmp.ne.s32.totalorder %s197, %s199
      %p206 = scmp.eq.s32.totalorder %s21, 1
      %p207 = por %p205, %p206
      %p208 = scmp.ne.s32.totalorder %s199, %s200
      %p209 = scmp.eq.s32.totalorder %s21, 0
      %p210 = por %p208, %p209
      %p211 = scmp.ne.s32.totalorder %s199, %s200
      %p212 = scmp.eq.s32.totalorder %s22, 1
      %p213 = por %p211, %p212
      %p215 = scmp.ne.s32.totalorder %s200, %s214
      %p216 = scmp.eq.s32.totalorder %s22, 0
      %p217 = por %p215, %p216
      %s218 = ssub.s32 %s16, %s23
      %p219 = scmp.eq.s32.totalorder %s218, 0
      %s221 = sadd.s32 %s220, 1
      %s222 = scalar_select %p219, %s220, %s221
      %p225 = pneg %p219
      %p226 = scmp.eq.s32.totalorder %s16, 1
      %p227 = por %p225, %p226
      %p228 = scmp.ne.s32.totalorder %s220, %s223
      %p229 = scmp.eq.s32.totalorder %s16, 0
      %p230 = por %p228, %p229
      %p231 = scmp.ne.s32.totalorder %s220, %s223
      %p232 = scmp.eq.s32.totalorder %s21, 1
      %p233 = por %p231, %p232
      %p234 = scmp.ne.s32.totalorder %s223, %s224
      %p235 = scmp.eq.s32.totalorder %s21, 0
      %p236 = por %p234, %p235
      %p237 = scmp.ne.s32.totalorder %s223, %s224
      %p238 = scmp.eq.s32.totalorder %s22, 1
      %p239 = por %p237, %p238
      %p241 = scmp.ne.s32.totalorder %s224, %s240
      %p242 = scmp.eq.s32.totalorder %s22, 0
      %p243 = por %p241, %p242
      %p244 = scmp.le.s32.totalorder 1, %s16
      %p245 = scmp.lt.s32.totalorder %s16, 3
      %p246 = pnand %p244, %p245
      %p247 = pneg %p246
      // Predicated region
      $region9: #{mlp4d_forward.1} parent=5 // pred_check
        _
      $region10: #{mlp4d_forward.1} parent=5 // pred_check_branch
        %249 = sbr.rel (%p246) target = $region12
      $region11: #{mlp4d_forward.1} parent=5 // pred_region
        %s250 = ssub.s32 %s16, 1
        // Predicated region
        $region13: #{mlp4d_forward.1} parent=11 // pred_check
          %p251 = pneg %p63
        $region14: #{mlp4d_forward.1} parent=11 // pred_check_branch
          %253 = sbr.rel (%p251) target = $region16
        $region15: #{mlp4d_forward.1} parent=11 // pred_region
          _
        $region16: #{mlp4d_forward.1} parent=11 // pred_fallthru
          _
        // Predicated region
        $region17: #{mlp4d_forward.1} parent=11 // pred_check
          %p254 = pneg %p84
        $region18: #{mlp4d_forward.1} parent=11 // pred_check_branch
          %256 = sbr.rel (%p254) target = $region20
        $region19: #{mlp4d_forward.1} parent=11 // pred_region
          _
        $region20: #{mlp4d_forward.1} parent=11 // pred_fallthru
          _
        // Predicated region
        $region21: #{mlp4d_forward.1} parent=11 // pred_check
          %p257 = pneg %p105
        $region22: #{mlp4d_forward.1} parent=11 // pred_check_branch
          %259 = sbr.rel (%p257) target = $region24
        $region23: #{mlp4d_forward.1} parent=11 // pred_region
          _
        $region24: #{mlp4d_forward.1} parent=11 // pred_fallthru
          _
        // Predicated region
        $region25: #{mlp4d_forward.1} parent=11 // pred_check
          %p260 = pneg %p126
        $region26: #{mlp4d_forward.1} parent=11 // pred_check_branch
          %262 = sbr.rel (%p260) target = $region28
        $region27: #{mlp4d_forward.1} parent=11 // pred_region
          _
        $region28: #{mlp4d_forward.1} parent=11 // pred_fallthru
          _
        // Predicated region
        $region29: #{mlp4d_forward.1} parent=11 // pred_check
          %p263 = pneg %p147
        $region30: #{mlp4d_forward.1} parent=11 // pred_check_branch
          %265 = sbr.rel (%p263) target = $region32
        $region31: #{mlp4d_forward.1} parent=11 // pred_region
          %267 = vsyncadd [#allocation3], 0
          %s268 = sshll.u32 %s5, 4
          %s269 = int_to_ptr.hbm [resolvable:$true] %s268
          %s270 = sshll.u32 [#allocation2], 4
          %s271 = int_to_ptr.vmem [resolvable:$true] %s270
          %276 = dma.hbm_to_vmem [thread:$0]  %s269, 2048, %s271, [#allocation3], 64, 64, 4
        $region32: #{mlp4d_forward.1} parent=11 // pred_fallthru
          _
        // Predicated region
        $region33: #{mlp4d_forward.1} parent=11 // pred_check
          %p277 = pneg %p168
        $region34: #{mlp4d_forward.1} parent=11 // pred_check_branch
          %279 = sbr.rel (%p277) target = $region36
        $region35: #{mlp4d_forward.1} parent=11 // pred_region
          _
        $region36: #{mlp4d_forward.1} parent=11 // pred_fallthru
          _
        // Predicated region
        $region37: #{mlp4d_forward.1} parent=11 // pred_check
          %p280 = pneg %p189
        $region38: #{mlp4d_forward.1} parent=11 // pred_check_branch
          %282 = sbr.rel (%p280) target = $region40
        $region39: #{mlp4d_forward.1} parent=11 // pred_region
          _
        $region40: #{mlp4d_forward.1} parent=11 // pred_fallthru
          _
        // Predicated region
        $region41: #{mlp4d_forward.1} parent=11 // pred_check
          %p283 = pneg %p210
        $region42: #{mlp4d_forward.1} parent=11 // pred_check_branch
          %285 = sbr.rel (%p283) target = $region44
        $region43: #{mlp4d_forward.1} parent=11 // pred_region
          _
        $region44: #{mlp4d_forward.1} parent=11 // pred_fallthru
          _
      $region12: #{mlp4d_forward.1} parent=5 // pred_fallthru
        _
      %p286 = scmp.lt.s32.totalorder %s16, 2
      // Predicated region
      $region45: #{mlp4d_forward.1} parent=5 // pred_check
        %p287 = pneg %p286
      $region46: #{mlp4d_forward.1} parent=5 // pred_check_branch
        %289 = sbr.rel (%p287) target = $region48
      $region47: #{mlp4d_forward.1} parent=5 // pred_region
        // Predicated region
        $region49: #{mlp4d_forward.1} parent=47 // pred_check
          %p290 = pneg %p36
        $region50: #{mlp4d_forward.1} parent=47 // pred_check_branch
          %292 = sbr.rel (%p290) target = $region52
        $region51: #{mlp4d_forward.1} parent=47 // pred_region
          %p293 = scmp.lt.s32.totalorder %s16, 1
          %s294 = scalar_select %p293, %s16, 1
          %s295 = smul.addr %s294, 4
          %s296 = scalar_lea.vmem %s0, %s295
        $region52: #{mlp4d_forward.1} parent=47 // pred_fallthru
          _
      $region48: #{mlp4d_forward.1} parent=5 // pred_fallthru
        _
      %p297 = scmp.le.s32.totalorder 1, %s16
      %p298 = scmp.lt.s32.totalorder %s16, 3
      %p299 = pnand %p297, %p298
      %p300 = pneg %p299
      // Predicated region
      $region53: #{mlp4d_forward.1} parent=5 // pred_check
        _
      $region54: #{mlp4d_forward.1} parent=5 // pred_check_branch
        %302 = sbr.rel (%p299) target = $region56
      $region55: #{mlp4d_forward.1} parent=5 // pred_region
        %s303 = ssub.s32 %s16, 1
        // Predicated region
        $region57: #{mlp4d_forward.1} parent=55 // pred_check
          %p304 = pneg %p147
        $region58: #{mlp4d_forward.1} parent=55 // pred_check_branch
          %306 = sbr.rel (%p304) target = $region60
        $region59: #{mlp4d_forward.1} parent=55 // pred_region
          %308 = dma.done [#allocation3], 2048
        $region60: #{mlp4d_forward.1} parent=55 // pred_fallthru
          _
        %p309 = scmp.lt.s32.totalorder %s21, 1
        %s310 = scalar_select %p309, %s21, 1
        %s311 = smul.addr %s310, 4
        %s312 = scalar_lea.vmem %s0, %s311
        %p313 = pneg %p42
        %p314 = pneg %p39
        %p315 = pneg %p63
        %p316 = pneg %p60
        %p317 = pneg %p84
        %p318 = pneg %p81
        %p319 = pneg %p105
        %p320 = pneg %p102
        %p321 = pneg %p126
        %p322 = pneg %p123
        %p323 = pneg %p147
        %p324 = pneg %p144
        %p325 = pneg %p168
        %p326 = pneg %p165
        %p327 = pneg %p189
        %p328 = pneg %p186
        %p329 = pneg %p210
        %p330 = pneg %p207
        %p331 = pneg %p236
        %p332 = pneg %p233
        %p333 = scmp.lt.s32.totalorder %s21, 1
        %s334 = scalar_select %p333, %s21, 1
        %s335 = smul.addr %s334, 4
        %s336 = smul.addr %s335, 8
        %s337 = scalar_lea.vmem %s9, %s336
        %p338 = scmp.lt.s32.totalorder %s21, 1
        %s339 = scalar_select %p338, %s21, 1
        %s340 = smul.addr %s339, 4
        %s341 = scalar_lea.vmem %s0, %s340
        %p342 = scmp.lt.s32.totalorder %s21, 1
        %s343 = scalar_select %p342, %s21, 1
        %s344 = smul.addr %s343, 4
        %s345 = smul.addr %s344, 8
        %s346 = scalar_lea.vmem %s9, %s345
        %v347 = vld [vmem:[%s341] sm:$0xf]
        %v348 = vld [vmem:[%s1] sm:$0xff]
        %v349 = vld [vmem:[%s1 + $0x8] sm:$0xff]
        %v350 = vld [vmem:[%s1 + $0x10] sm:$0xff]
        %v351 = vld [vmem:[%s1 + $0x18] sm:$0xff]
        %v352 = vld [vmem:[%s2] sm:$0xff]
        %v353 = vld [vmem:[%s2 + $0x8] sm:$0xff]
        %v354 = vld [vmem:[%s2 + $0x10] sm:$0xff]
        %v355 = vld [vmem:[%s2 + $0x18] sm:$0xff]
        %357 = vset.pattern.permute.xlu0 0
        %358 = vperm.xlu0 %357, %v348
        %v359 = vpop.permute.xlu0 %358
        %362 = vset.pattern.permute.xlu0 0
        %363 = vperm.xlu0 %362, %v349
        %v364 = vpop.permute.xlu0 %363
        %367 = vset.pattern.permute.xlu0 0
        %368 = vperm.xlu0 %367, %v350
        %v369 = vpop.permute.xlu0 %368
        %372 = vset.pattern.permute.xlu0 0
        %373 = vperm.xlu0 %372, %v351
        %v374 = vpop.permute.xlu0 %373
        %v376 = vperm.slane %v347, 0
        %v377 = vmul.f32 %v359, %v376
        %v378 = vmul.f32 %v364, %v376
        %v379 = vmul.f32 %v369, %v376
        %v380 = vmul.f32 %v374, %v376
        %381 = vset.pattern.permute.xlu0 1
        %382 = vperm.xlu0 %381, %v348
        %v383 = vpop.permute.xlu0 %382
        %385 = vset.pattern.permute.xlu0 1
        %386 = vperm.xlu0 %385, %v349
        %v387 = vpop.permute.xlu0 %386
        %389 = vset.pattern.permute.xlu0 1
        %390 = vperm.xlu0 %389, %v350
        %v391 = vpop.permute.xlu0 %390
        %393 = vset.pattern.permute.xlu0 1
        %394 = vperm.xlu0 %393, %v351
        %v395 = vpop.permute.xlu0 %394
        %v397 = vperm.slane %v347, 1
        %v398 = vmul.f32 %v383, %v397
        %v399 = vmul.f32 %v387, %v397
        %v400 = vmul.f32 %v391, %v397
        %v401 = vmul.f32 %v395, %v397
        %v402 = vadd.f32 %v377, %v398
        %v403 = vadd.f32 %v378, %v399
        %v404 = vadd.f32 %v379, %v400
        %v405 = vadd.f32 %v380, %v401
        %406 = vset.pattern.permute.xlu0 2
        %407 = vperm.xlu0 %406, %v348
        %v408 = vpop.permute.xlu0 %407
        %410 = vset.pattern.permute.xlu0 2
        %411 = vperm.xlu0 %410, %v349
        %v412 = vpop.permute.xlu0 %411
        %414 = vset.pattern.permute.xlu0 2
        %415 = vperm.xlu0 %414, %v350
        %v416 = vpop.permute.xlu0 %415
        %418 = vset.pattern.permute.xlu0 2
        %419 = vperm.xlu0 %418, %v351
        %v420 = vpop.permute.xlu0 %419
        %v422 = vperm.slane %v347, 2
        %v423 = vmul.f32 %v408, %v422
        %v424 = vmul.f32 %v412, %v422
        %v425 = vmul.f32 %v416, %v422
        %v426 = vmul.f32 %v420, %v422
        %v427 = vadd.f32 %v402, %v423
        %v428 = vadd.f32 %v403, %v424
        %v429 = vadd.f32 %v404, %v425
        %v430 = vadd.f32 %v405, %v426
        %431 = vset.pattern.permute.xlu0 3
        %432 = vperm.xlu0 %431, %v348
        %v433 = vpop.permute.xlu0 %432
        %435 = vset.pattern.permute.xlu0 3
        %436 = vperm.xlu0 %435, %v349
        %v437 = vpop.permute.xlu0 %436
        %439 = vset.pattern.permute.xlu0 3
        %440 = vperm.xlu0 %439, %v350
        %v441 = vpop.permute.xlu0 %440
        %443 = vset.pattern.permute.xlu0 3
        %444 = vperm.xlu0 %443, %v351
        %v445 = vpop.permute.xlu0 %444
        %v447 = vperm.slane %v347, 3
        %v448 = vmul.f32 %v433, %v447
        %v449 = vmul.f32 %v437, %v447
        %v450 = vmul.f32 %v441, %v447
        %v451 = vmul.f32 %v445, %v447
        %v452 = vadd.f32 %v427, %v448
        %v453 = vadd.f32 %v428, %v449
        %v454 = vadd.f32 %v429, %v450
        %v455 = vadd.f32 %v430, %v451
        %457 = vset.pattern.permute.xlu0 0
        %458 = vperm.xlu0 %457, %v352
        %v459 = vpop.permute.xlu0 %458
        %462 = vset.pattern.permute.xlu0 0
        %463 = vperm.xlu0 %462, %v353
        %v464 = vpop.permute.xlu0 %463
        %467 = vset.pattern.permute.xlu0 0
        %468 = vperm.xlu0 %467, %v354
        %v469 = vpop.permute.xlu0 %468
        %472 = vset.pattern.permute.xlu0 0
        %473 = vperm.xlu0 %472, %v355
        %v474 = vpop.permute.xlu0 %473
        %v476 = vadd.f32 %v452, %v459
        %v477 = vadd.f32 %v453, %v464
        %v478 = vadd.f32 %v454, %v469
        %v479 = vadd.f32 %v455, %v474
        %vm480 = vcmp.gt.f32.partialorder %v476, 0.0
        %vm481 = vcmp.gt.f32.partialorder %v477, 0.0
        %vm482 = vcmp.gt.f32.partialorder %v478, 0.0
        %vm483 = vcmp.gt.f32.partialorder %v479, 0.0
        %v484 = vmin.f32 %v476, 0.0
        %v485 = vmin.f32 %v477, 0.0
        %v486 = vmin.f32 %v478, 0.0
        %v487 = vmin.f32 %v479, 0.0
        %v488 = vmul.f32 %v484, 1.442695
        %v489 = vpow.pop %v488
        %v490 = vmul.f32 %v485, 1.442695
        %v491 = vpow.pop %v490
        %v492 = vmul.f32 %v486, 1.442695
        %v493 = vpow.pop %v492
        %v494 = vmul.f32 %v487, 1.442695
        %v495 = vpow.pop %v494
        %v496 = vsub.f32 %v489, 1.0
        %v497 = vsub.f32 %v491, 1.0
        %v498 = vsub.f32 %v493, 1.0
        %v499 = vsub.f32 %v495, 1.0
        %v500 = vsel %vm480, %v476, %v496
        %v501 = vsel %vm481, %v477, %v497
        %v502 = vsel %vm482, %v478, %v498
        %v503 = vsel %vm483, %v479, %v499
        %v504 = vpack.c.bf16 %v501, %v500
        %v505 = vpack.c.bf16 %v503, %v502
        %v506 = vld [vmem:[%s3] sm:$0xff]
        %v507 = vld [vmem:[%s3 + $0x8] sm:$0xff]
        %v508 = vld [vmem:[%s3 + $0x10] sm:$0xff]
        %v509 = vld [vmem:[%s3 + $0x18] sm:$0xff]
        %v510 = vld [vmem:[%s3 + $0x20] sm:$0xff]
        %v511 = vld [vmem:[%s3 + $0x28] sm:$0xff]
        %v512 = vld [vmem:[%s3 + $0x30] sm:$0xff]
        %v513 = vld [vmem:[%s3 + $0x38] sm:$0xff]
        %v514 = vld [vmem:[%s3 + $0x40] sm:$0xff]
        %v515 = vld [vmem:[%s3 + $0x48] sm:$0xff]
        %v516 = vld [vmem:[%s3 + $0x50] sm:$0xff]
        %v517 = vld [vmem:[%s3 + $0x58] sm:$0xff]
        %v518 = vld [vmem:[%s3 + $0x60] sm:$0xff]
        %v519 = vld [vmem:[%s3 + $0x68] sm:$0xff]
        %v520 = vld [vmem:[%s3 + $0x70] sm:$0xff]
        %v521 = vld [vmem:[%s3 + $0x78] sm:$0xff]
        %v522 = vld [vmem:[%s4] sm:$0x3]
        %v524 = vperm.slane %v522, 0
        %v525 = vperm.slane %v522, 1
        %v544 = vunpack.c.l.b16 %v506
        %v545 = vunpack.c.h.b16 %v506
        %v546 = vunpack.c.l.b16 %v507
        %v547 = vunpack.c.h.b16 %v507
        %v548 = vunpack.c.l.b16 %v508
        %v549 = vunpack.c.h.b16 %v508
        %v550 = vunpack.c.l.b16 %v509
        %v551 = vunpack.c.h.b16 %v509
        %v552 = vunpack.c.l.b16 %v510
        %v553 = vunpack.c.h.b16 %v510
        %v554 = vunpack.c.l.b16 %v511
        %v555 = vunpack.c.h.b16 %v511
        %v556 = vunpack.c.l.b16 %v512
        %v557 = vunpack.c.h.b16 %v512
        %v558 = vunpack.c.l.b16 %v513
        %v559 = vunpack.c.h.b16 %v513
        %v560 = vunpack.c.l.b16 %v514
        %v561 = vunpack.c.h.b16 %v514
        %v562 = vunpack.c.l.b16 %v515
        %v563 = vunpack.c.h.b16 %v515
        %v564 = vunpack.c.l.b16 %v516
        %v565 = vunpack.c.h.b16 %v516
        %v566 = vunpack.c.l.b16 %v517
        %v567 = vunpack.c.h.b16 %v517
        %v568 = vunpack.c.l.b16 %v518
        %v569 = vunpack.c.h.b16 %v518
        %v570 = vunpack.c.l.b16 %v519
        %v571 = vunpack.c.h.b16 %v519
        %v572 = vunpack.c.l.b16 %v520
        %v573 = vunpack.c.h.b16 %v520
        %v574 = vunpack.c.l.b16 %v521
        %v575 = vunpack.c.h.b16 %v521
        %v576 = vpack.c.b16 %v546, %v544
        %v577 = vpack.c.b16 %v547, %v545
        %v578 = vpack.c.b16 %v550, %v548
        %v579 = vpack.c.b16 %v551, %v549
        %v580 = vpack.c.b16 %v554, %v552
        %v581 = vpack.c.b16 %v555, %v553
        %v582 = vpack.c.b16 %v558, %v556
        %v583 = vpack.c.b16 %v559, %v557
        %v584 = vpack.c.b16 %v562, %v560
        %v585 = vpack.c.b16 %v563, %v561
        %v586 = vpack.c.b16 %v566, %v564
        %v587 = vpack.c.b16 %v567, %v565
        %v588 = vpack.c.b16 %v570, %v568
        %v589 = vpack.c.b16 %v571, %v569
        %v590 = vpack.c.b16 %v574, %v572
        %v591 = vpack.c.b16 %v575, %v573
        %608 = vmatpush.bf16.msra.mxu0 %v590
        %609 = vmatpush.bf16.msra.mxu0 %v588
        %610 = vmatpush.bf16.msra.mxu0 %v586
        %611 = vmatpush.bf16.msra.mxu0 %v584
        %612 = vmatpush.bf16.msra.mxu0 %v582
        %613 = vmatpush.bf16.msra.mxu0 %v580
        %614 = vmatpush.bf16.msra.mxu0 %v578
        %615 = vmatpush.bf16.msra.mxu0 %v576
        %616 = vmatmul.bf16.gmra.mxu0 %v504
        %v617 = vpop.f32.mrf.mxu0
        %v618 = vadd.f32 %v524, %v617
        %v619 = vpop.f32.mrf.mxu0
        %v620 = vadd.f32 %v524, %v619
        %621 = vmatmul.bf16.gmra.mxu0 %v505
        %v622 = vpop.f32.mrf.mxu0
        %v623 = vadd.f32 %v524, %v622
        %v624 = vpop.f32.mrf.mxu0
        %v625 = vadd.f32 %v524, %v624
        %626 = vdwg.mxu0
        %627 = vmatpush.bf16.msra.mxu0 %v591
        %628 = vmatpush.bf16.msra.mxu0 %v589
        %629 = vmatpush.bf16.msra.mxu0 %v587
        %630 = vmatpush.bf16.msra.mxu0 %v585
        %631 = vmatpush.bf16.msra.mxu0 %v583
        %632 = vmatpush.bf16.msra.mxu0 %v581
        %633 = vmatpush.bf16.msra.mxu0 %v579
        %634 = vmatpush.bf16.msra.mxu0 %v577
        %635 = vmatmul.bf16.gmra.mxu0 %v504
        %v636 = vpop.f32.mrf.mxu0
        %v637 = vadd.f32 %v525, %v636
        %v638 = vpop.f32.mrf.mxu0
        %v639 = vadd.f32 %v525, %v638
        %640 = vmatmul.bf16.gmra.mxu0 %v505
        %v641 = vpop.f32.mrf.mxu0
        %v642 = vadd.f32 %v525, %v641
        %v643 = vpop.f32.mrf.mxu0
        %v644 = vadd.f32 %v525, %v643
        %645 = vdwg.mxu0
        %vm646 = vcmp.gt.f32.partialorder %v618, 0.0
        %vm647 = vcmp.gt.f32.partialorder %v637, 0.0
        %vm648 = vcmp.gt.f32.partialorder %v620, 0.0
        %vm649 = vcmp.gt.f32.partialorder %v639, 0.0
        %vm650 = vcmp.gt.f32.partialorder %v623, 0.0
        %vm651 = vcmp.gt.f32.partialorder %v642, 0.0
        %vm652 = vcmp.gt.f32.partialorder %v625, 0.0
        %vm653 = vcmp.gt.f32.partialorder %v644, 0.0
        %v654 = vmin.f32 %v618, 0.0
        %v655 = vmin.f32 %v637, 0.0
        %v656 = vmin.f32 %v620, 0.0
        %v657 = vmin.f32 %v639, 0.0
        %v658 = vmin.f32 %v623, 0.0
        %v659 = vmin.f32 %v642, 0.0
        %v660 = vmin.f32 %v625, 0.0
        %v661 = vmin.f32 %v644, 0.0
        %v662 = vmul.f32 %v654, 1.442695
        %v663 = vpow.pop %v662
        %v664 = vmul.f32 %v655, 1.442695
        %v665 = vpow.pop %v664
        %v666 = vmul.f32 %v656, 1.442695
        %v667 = vpow.pop %v666
        %v668 = vmul.f32 %v657, 1.442695
        %v669 = vpow.pop %v668
        %v670 = vmul.f32 %v658, 1.442695
        %v671 = vpow.pop %v670
        %v672 = vmul.f32 %v659, 1.442695
        %v673 = vpow.pop %v672
        %v674 = vmul.f32 %v660, 1.442695
        %v675 = vpow.pop %v674
        %v676 = vmul.f32 %v661, 1.442695
        %v677 = vpow.pop %v676
        %v678 = vsub.f32 %v663, 1.0
        %v679 = vsub.f32 %v665, 1.0
        %v680 = vsub.f32 %v667, 1.0
        %v681 = vsub.f32 %v669, 1.0
        %v682 = vsub.f32 %v671, 1.0
        %v683 = vsub.f32 %v673, 1.0
        %v684 = vsub.f32 %v675, 1.0
        %v685 = vsub.f32 %v677, 1.0
        %v686 = vsel %vm646, %v618, %v678
        %v687 = vsel %vm647, %v637, %v679
        %v688 = vsel %vm648, %v620, %v680
        %v689 = vsel %vm649, %v639, %v681
        %v690 = vsel %vm650, %v623, %v682
        %v691 = vsel %vm651, %v642, %v683
        %v692 = vsel %vm652, %v625, %v684
        %v693 = vsel %vm653, %v644, %v685
        %v694 = vpack.c.bf16 %v688, %v686
        %v695 = vpack.c.bf16 %v689, %v687
        %v696 = vpack.c.bf16 %v692, %v690
        %v697 = vpack.c.bf16 %v693, %v691
        %v698 = vld [vmem:[#allocation2] sm:$0xf]
        %v699 = vld [vmem:[#allocation2 + $0x4] sm:$0xf]
        %v700 = vld [vmem:[#allocation2 + $0x8] sm:$0xf]
        %v701 = vld [vmem:[#allocation2 + $0xc] sm:$0xf]
        %v702 = vld [vmem:[#allocation2 + $0x10] sm:$0xf]
        %v703 = vld [vmem:[#allocation2 + $0x14] sm:$0xf]
        %v704 = vld [vmem:[#allocation2 + $0x18] sm:$0xf]
        %v705 = vld [vmem:[#allocation2 + $0x1c] sm:$0xf]
        %v706 = vld [vmem:[#allocation2 + $0x20] sm:$0xf]
        %v707 = vld [vmem:[#allocation2 + $0x24] sm:$0xf]
        %v708 = vld [vmem:[#allocation2 + $0x28] sm:$0xf]
        %v709 = vld [vmem:[#allocation2 + $0x2c] sm:$0xf]
        %v710 = vld [vmem:[#allocation2 + $0x30] sm:$0xf]
        %v711 = vld [vmem:[#allocation2 + $0x34] sm:$0xf]
        %v712 = vld [vmem:[#allocation2 + $0x38] sm:$0xf]
        %v713 = vld [vmem:[#allocation2 + $0x3c] sm:$0xf]
        %v714 = vld [vmem:[#allocation2 + $0x40] sm:$0xf]
        %v715 = vld [vmem:[#allocation2 + $0x44] sm:$0xf]
        %v716 = vld [vmem:[#allocation2 + $0x48] sm:$0xf]
        %v717 = vld [vmem:[#allocation2 + $0x4c] sm:$0xf]
        %v718 = vld [vmem:[#allocation2 + $0x50] sm:$0xf]
        %v719 = vld [vmem:[#allocation2 + $0x54] sm:$0xf]
        %v720 = vld [vmem:[#allocation2 + $0x58] sm:$0xf]
        %v721 = vld [vmem:[#allocation2 + $0x5c] sm:$0xf]
        %v722 = vld [vmem:[#allocation2 + $0x60] sm:$0xf]
        %v723 = vld [vmem:[#allocation2 + $0x64] sm:$0xf]
        %v724 = vld [vmem:[#allocation2 + $0x68] sm:$0xf]
        %v725 = vld [vmem:[#allocation2 + $0x6c] sm:$0xf]
        %v726 = vld [vmem:[#allocation2 + $0x70] sm:$0xf]
        %v727 = vld [vmem:[#allocation2 + $0x74] sm:$0xf]
        %v728 = vld [vmem:[#allocation2 + $0x78] sm:$0xf]
        %v729 = vld [vmem:[#allocation2 + $0x7c] sm:$0xf]
        %v730 = vld [vmem:[%s6] sm:$0x1]
        %v732 = vperm.slane %v730, 0
        %v766 = vunpack.c.l.b16 %v698
        %v767 = vunpack.c.l.b16 %v699
        %v768 = vunpack.c.l.b16 %v700
        %v769 = vunpack.c.l.b16 %v701
        %v770 = vunpack.c.l.b16 %v702
        %v771 = vunpack.c.l.b16 %v703
        %v772 = vunpack.c.l.b16 %v704
        %v773 = vunpack.c.l.b16 %v705
        %v774 = vunpack.c.l.b16 %v706
        %v775 = vunpack.c.l.b16 %v707
        %v776 = vunpack.c.l.b16 %v708
        %v777 = vunpack.c.l.b16 %v709
        %v778 = vunpack.c.l.b16 %v710
        %v779 = vunpack.c.l.b16 %v711
        %v780 = vunpack.c.l.b16 %v712
        %v781 = vunpack.c.l.b16 %v713
        %v782 = vunpack.c.l.b16 %v714
        %v783 = vunpack.c.l.b16 %v715
        %v784 = vunpack.c.l.b16 %v716
        %v785 = vunpack.c.l.b16 %v717
        %v786 = vunpack.c.l.b16 %v718
        %v787 = vunpack.c.l.b16 %v719
        %v788 = vunpack.c.l.b16 %v720
        %v789 = vunpack.c.l.b16 %v721
        %v790 = vunpack.c.l.b16 %v722
        %v791 = vunpack.c.l.b16 %v723
        %v792 = vunpack.c.l.b16 %v724
        %v793 = vunpack.c.l.b16 %v725
        %v794 = vunpack.c.l.b16 %v726
        %v795 = vunpack.c.l.b16 %v727
        %v796 = vunpack.c.l.b16 %v728
        %v797 = vunpack.c.l.b16 %v729
        %v798 = vpack.c.b16 %v767, %v766
        %v799 = vpack.c.b16 %v769, %v768
        %v800 = vpack.c.b16 %v771, %v770
        %v801 = vpack.c.b16 %v773, %v772
        %v802 = vpack.c.b16 %v775, %v774
        %v803 = vpack.c.b16 %v777, %v776
        %v804 = vpack.c.b16 %v779, %v778
        %v805 = vpack.c.b16 %v781, %v780
        %v806 = vpack.c.b16 %v783, %v782
        %v807 = vpack.c.b16 %v785, %v784
        %v808 = vpack.c.b16 %v787, %v786
        %v809 = vpack.c.b16 %v789, %v788
        %v810 = vpack.c.b16 %v791, %v790
        %v811 = vpack.c.b16 %v793, %v792
        %v812 = vpack.c.b16 %v795, %v794
        %v813 = vpack.c.b16 %v797, %v796
        %830 = vmatpush.bf16.msra.mxu0 %v805
        %831 = vmatpush.bf16.msra.mxu0 %v804
        %832 = vmatpush.bf16.msra.mxu0 %v803
        %833 = vmatpush.bf16.msra.mxu0 %v802
        %834 = vmatpush.bf16.msra.mxu0 %v801
        %835 = vmatpush.bf16.msra.mxu0 %v800
        %836 = vmatpush.bf16.msra.mxu0 %v799
        %837 = vmatpush.bf16.msra.mxu0 %v798
        %838 = vmatmul.bf16.gmra.mxu0 %v694
        %v839 = vpop.f32.mrf.mxu0
        %v840 = vadd.f32 %v732, %v839
        %v841 = vpop.f32.mrf.mxu0
        %v842 = vadd.f32 %v732, %v841
        %843 = vmatmul.bf16.gmra.mxu0 %v696
        %v844 = vpop.f32.mrf.mxu0
        %v845 = vadd.f32 %v732, %v844
        %v846 = vpop.f32.mrf.mxu0
        %v847 = vadd.f32 %v732, %v846
        %848 = vdwg.mxu0
        %849 = vmatpush.bf16.msra.mxu0 %v813
        %850 = vmatpush.bf16.msra.mxu0 %v812
        %851 = vmatpush.bf16.msra.mxu0 %v811
        %852 = vmatpush.bf16.msra.mxu0 %v810
        %853 = vmatpush.bf16.msra.mxu0 %v809
        %854 = vmatpush.bf16.msra.mxu0 %v808
        %855 = vmatpush.bf16.msra.mxu0 %v807
        %856 = vmatpush.bf16.msra.mxu0 %v806
        %857 = vmatmul.bf16.gmra.mxu0 %v695
        %v858 = vpop.f32.mrf.mxu0
        %v859 = vadd.f32 %v840, %v858
        %v860 = vpop.f32.mrf.mxu0
        %v861 = vadd.f32 %v842, %v860
        %862 = vmatmul.bf16.gmra.mxu0 %v697
        %v863 = vpop.f32.mrf.mxu0
        %v864 = vadd.f32 %v845, %v863
        %v865 = vpop.f32.mrf.mxu0
        %v866 = vadd.f32 %v847, %v865
        %867 = vdwg.mxu0
        %vm868 = vcmp.gt.f32.partialorder %v859, 0.0
        %vm869 = vcmp.gt.f32.partialorder %v861, 0.0
        %vm870 = vcmp.gt.f32.partialorder %v864, 0.0
        %vm871 = vcmp.gt.f32.partialorder %v866, 0.0
        %v872 = vmin.f32 %v859, 0.0
        %v873 = vmin.f32 %v861, 0.0
        %v874 = vmin.f32 %v864, 0.0
        %v875 = vmin.f32 %v866, 0.0
        %v876 = vmul.f32 %v872, 1.442695
        %v877 = vpow.pop %v876
        %v878 = vmul.f32 %v873, 1.442695
        %v879 = vpow.pop %v878
        %v880 = vmul.f32 %v874, 1.442695
        %v881 = vpow.pop %v880
        %v882 = vmul.f32 %v875, 1.442695
        %v883 = vpow.pop %v882
        %v884 = vsub.f32 %v877, 1.0
        %v885 = vsub.f32 %v879, 1.0
        %v886 = vsub.f32 %v881, 1.0
        %v887 = vsub.f32 %v883, 1.0
        %v888 = vsel %vm868, %v859, %v884
        %v889 = vsel %vm869, %v861, %v885
        %v890 = vsel %vm870, %v864, %v886
        %v891 = vsel %vm871, %v866, %v887
        %892 = vadd.xlane.f32.xlu0 %v888
        %v893 = vpop.xlane.xlu0 %892
        %894 = vadd.xlane.f32.xlu0 %v889
        %v895 = vpop.xlane.xlu0 %894
        %896 = vadd.xlane.f32.xlu0 %v890
        %v897 = vpop.xlane.xlu0 %896
        %898 = vadd.xlane.f32.xlu0 %v891
        %v899 = vpop.xlane.xlu0 %898
        %v900 = vmul.f32 %v888, %v888
        %v901 = vmul.f32 %v889, %v889
        %v902 = vmul.f32 %v890, %v890
        %v903 = vmul.f32 %v891, %v891
        %904 = vadd.xlane.f32.xlu0 %v900
        %v905 = vpop.xlane.xlu0 %904
        %906 = vadd.xlane.f32.xlu0 %v901
        %v907 = vpop.xlane.xlu0 %906
        %908 = vadd.xlane.f32.xlu0 %v902
        %v909 = vpop.xlane.xlu0 %908
        %910 = vadd.xlane.f32.xlu0 %v903
        %v911 = vpop.xlane.xlu0 %910
        %v912 = vmul.f32 %v893, 0.0078125
        %v913 = vmul.f32 %v895, 0.0078125
        %v914 = vmul.f32 %v897, 0.0078125
        %v915 = vmul.f32 %v899, 0.0078125
        %v916 = vmul.f32 %v905, 0.0078125
        %v917 = vmul.f32 %v907, 0.0078125
        %v918 = vmul.f32 %v909, 0.0078125
        %v919 = vmul.f32 %v911, 0.0078125
        %v920 = vmul.f32 %v912, %v912
        %v921 = vmul.f32 %v913, %v913
        %v922 = vmul.f32 %v914, %v914
        %v923 = vmul.f32 %v915, %v915
        %v924 = vsub.f32 %v916, %v920
        %v925 = vsub.f32 %v917, %v921
        %v926 = vsub.f32 %v918, %v922
        %v927 = vsub.f32 %v919, %v923
        %v928 = vsub.f32 %v888, %v912
        %v929 = vsub.f32 %v889, %v913
        %v930 = vsub.f32 %v890, %v914
        %v931 = vsub.f32 %v891, %v915
        %v932 = vadd.f32 %v924, 1e-05
        %v933 = vadd.f32 %v925, 1e-05
        %v934 = vadd.f32 %v926, 1e-05
        %v935 = vadd.f32 %v927, 1e-05
        %v936 = vrsqrt.pop %v932
        %v937 = vmul.f32 %v936, %v932
        %v938 = vmul.f32 %v937, %v936
        %v939 = vmul.f32 0.5, %v938
        %v940 = vsub.f32 1.5, %v939
        %v941 = vmul.f32 %v936, %v940
        %vm942 = vweird.f32 %v932
        %vm943 = vweird.f32 %v936
        %vm944 = vmor %vm942, %vm943
        %v945 = vsel %vm944, %v936, %v941
        %v946 = vrsqrt.pop %v933
        %v947 = vmul.f32 %v946, %v933
        %v948 = vmul.f32 %v947, %v946
        %v949 = vmul.f32 0.5, %v948
        %v950 = vsub.f32 1.5, %v949
        %v951 = vmul.f32 %v946, %v950
        %vm952 = vweird.f32 %v933
        %vm953 = vweird.f32 %v946
        %vm954 = vmor %vm952, %vm953
        %v955 = vsel %vm954, %v946, %v951
        %v956 = vrsqrt.pop %v934
        %v957 = vmul.f32 %v956, %v934
        %v958 = vmul.f32 %v957, %v956
        %v959 = vmul.f32 0.5, %v958
        %v960 = vsub.f32 1.5, %v959
        %v961 = vmul.f32 %v956, %v960
        %vm962 = vweird.f32 %v934
        %vm963 = vweird.f32 %v956
        %vm964 = vmor %vm962, %vm963
        %v965 = vsel %vm964, %v956, %v961
        %v966 = vrsqrt.pop %v935
        %v967 = vmul.f32 %v966, %v935
        %v968 = vmul.f32 %v967, %v966
        %v969 = vmul.f32 0.5, %v968
        %v970 = vsub.f32 1.5, %v969
        %v971 = vmul.f32 %v966, %v970
        %vm972 = vweird.f32 %v935
        %vm973 = vweird.f32 %v966
        %vm974 = vmor %vm972, %vm973
        %v975 = vsel %vm974, %v966, %v971
        %v976 = vmul.f32 %v928, %v945
        %v977 = vmul.f32 %v929, %v955
        %v978 = vmul.f32 %v930, %v965
        %v979 = vmul.f32 %v931, %v975
        %v980 = vld [vmem:[%s7] sm:$0x1]
        %v982 = vperm.slane %v980, 0
        %v984 = vmul.f32 %v976, %v982
        %v985 = vmul.f32 %v977, %v982
        %v986 = vmul.f32 %v978, %v982
        %v987 = vmul.f32 %v979, %v982
        %v988 = vld [vmem:[%s8] sm:$0x1]
        %v990 = vperm.slane %v988, 0
        %v992 = vadd.f32 %v984, %v990
        %v993 = vadd.f32 %v985, %v990
        %v994 = vadd.f32 %v986, %v990
        %v995 = vadd.f32 %v987, %v990
        %996 = vst [vmem:[%s346] sm:$0xff] %v992
        %997 = vst [vmem:[%s346 + $0x8] sm:$0xff] %v993
        %998 = vst [vmem:[%s346 + $0x10] sm:$0xff] %v994
        %999 = vst [vmem:[%s346 + $0x18] sm:$0xff] %v995
        %p1000 = scmp.lt.s32.totalorder %s21, 1
        %s1001 = scalar_select %p1000, %s21, 1
        %s1002 = smul.addr %s1001, 4
        %s1003 = smul.addr %s1002, 8
        %s1004 = scalar_lea.vmem %s9, %s1003
        // Predicated region
        $region61: #{mlp4d_forward.1} parent=55 // pred_check
          %p1005 = pneg %p233
        $region62: #{mlp4d_forward.1} parent=55 // pred_check_branch
          %1007 = sbr.rel (%p1005) target = $region64
        $region63: #{mlp4d_forward.1} parent=55 // pred_region
          _
        $region64: #{mlp4d_forward.1} parent=55 // pred_fallthru
          _
      $region56: #{mlp4d_forward.1} parent=5 // pred_fallthru
        _
      %p1008 = scmp.le.s32.totalorder 2, %s16
      // Predicated region
      $region65: #{mlp4d_forward.1} parent=5 // pred_check
        %p1009 = pneg %p1008
      $region66: #{mlp4d_forward.1} parent=5 // pred_check_branch
        %1011 = sbr.rel (%p1009) target = $region68
      $region67: #{mlp4d_forward.1} parent=5 // pred_region
        %s1012 = ssub.s32 %s16, 2
        // Predicated region
        $region69: #{mlp4d_forward.1} parent=67 // pred_check
          %p1013 = pneg %p239
        $region70: #{mlp4d_forward.1} parent=67 // pred_check_branch
          %1015 = sbr.rel (%p1013) target = $region72
        $region71: #{mlp4d_forward.1} parent=67 // pred_region
          %p1016 = scmp.lt.s32.totalorder %s22, 1
          %s1017 = scalar_select %p1016, %s22, 1
          %s1018 = smul.addr %s1017, 4
          %s1019 = smul.addr %s1018, 8
          %s1020 = scalar_lea.vmem %s9, %s1019
        $region72: #{mlp4d_forward.1} parent=67 // pred_fallthru
          _
      $region68: #{mlp4d_forward.1} parent=5 // pred_fallthru
        _
    $region6: #{mlp4d_forward.1} parent=1 // loop_footer
      %s20 = sadd.s32 1, %s16
    $region7: #{mlp4d_forward.1} parent=1 // loop_footer_branch
      %15 = sbr.rel target = $region3
    $region8: #{mlp4d_forward.1} parent=1 // loop_exit
      _
    %1021 = vsyncpa [#allocation3], 1
    %s1022 = scalar_lea.sflag [#allocation3], 1
    %1023 = vsyncpa %s1022, 1

</llo_original>
